<compile_context>
chip_gen: v6e
topology: v6e:2x2x1
jax: 0.10.0
libtpu: 0.0.40
codegen_flags: <defaults>
</compile_context>

<pallas_src>
import functools

import jax
import jax.numpy as jnp
from jax import lax
from jax.experimental import pallas as pl
from jax.experimental.pallas import tpu as pltpu

N_LAYERS = 13
_LANES = 128
_CHUNK = 64  # rows per in-kernel chunk (8 f32 vregs); multiple of 16 for bf16 packing


def _bert_concat_kernel(w_ref, x_ref, o_ref, *, chunk):
    # w_ref: SMEM (13,) f32      = weights * bias (bias folded in the wrapper)
    # x_ref: VMEM (13, tm, 128)  input block (f32 or bf16)
    # o_ref: VMEM (tm, 128)      output block (same dtype as input)
    tm = o_ref.shape[0]
    n_chunks = tm // chunk

    # Hoist the 13 SMEM scalar reads out of every loop (filler cleanup).
    w = [w_ref[l] for l in range(N_LAYERS)]

    def process(r0):
        # Pass 1: running max over the layer axis, in the input dtype (exact for
        # max; bf16 packs (16,128)/vreg on v6e/v7x).  Live state: one chunk.
        m = x_ref[0, pl.ds(r0, chunk), :]
        for l in range(1, N_LAYERS):
            m = jnp.maximum(m, x_ref[l, pl.ds(r0, chunk), :])
        mf = m.astype(jnp.float32)

        # Pass 2: fused exp + weighted accumulation in f32.  The (13, chunk, 128)
        # softmax tensor is never materialized; m/denom/num stay vreg-resident.
        # The subtraction is done in f32 so bf16 inputs only change results
        # through input quantization (exp argument stays exact).
        denom = None
        num = None
        for l in range(N_LAYERS):
            e = jnp.exp(x_ref[l, pl.ds(r0, chunk), :].astype(jnp.float32) - mf)
            denom = e if denom is None else denom + e
            num = e * w[l] if num is None else num + e * w[l]

        # Exact divide: kernel is HBM-bound so this is free and matches the
        # PyTorch softmax + sum reference bit-for-bit-closer than approx recip.
        o_ref[pl.ds(r0, chunk), :] = (num / denom).astype(o_ref.dtype)

    if n_chunks == 1:
        process(0)
    else:
        def body(c, carry):
            process(pl.multiple_of(c * chunk, chunk))
            return carry
        lax.fori_loop(0, n_chunks, body, 0, unroll=2)


def _vmem_capacity_bytes():
    try:
        info = pltpu.get_tpu_info()
        cap = getattr(info, "vmem_capacity_bytes", None)
        if cap:
            return int(cap)
    except Exception:
        pass
    return 64 * 1024 * 1024  # conservative default (v7x per-TC VMEM)


def bert_concat(x, weights, bias):
    """x: [13, B, T, F] (float32 or bfloat16) -> [B, T, F, 1] in x.dtype."""
    L, B, T, F = x.shape
    assert L == N_LAYERS
    N = B * T * F
    dtype = x.dtype
    itemsize = jnp.dtype(dtype).itemsize

    # Lane-dense layout: flatten (B, T, F) and view it as rows of 128 lanes.
    xf = x.reshape(L, N)  # contiguous reshape: no copy
    if N % _LANES != 0:
        # Rare ragged-lane path (real BERT features are 768/1024, so this never
        # triggers and the common path has zero wrapper copies).
        # TODO(synk): handle the ragged lane tail with an in-kernel masked store
        # instead of this padded XLA copy.
        xf = jnp.pad(xf, ((0, 0), (0, (-N) % _LANES)))
    Npad = xf.shape[1]
    R = Npad // _LANES
    x3 = xf.reshape(L, R, _LANES)

    # Per-generation row-tile sizing: bigger tiles amortize the ~0.35us/grid-step
    # overhead on the 128 MiB-VMEM parts; capped for v7x's 64 MiB per-TC VMEM.
    big_vmem = _vmem_capacity_bytes() >= 100 * 1024 * 1024
    if big_vmem:
        target_rows = 4096                       # v5e / v6e (128 MiB VMEM)
    else:
        target_rows = 3072 if itemsize <= 2 else 2048   # v7x (64 MiB per TC)

    if R < 2 * _CHUNK:
        # Tiny input: one block covering all rows, processed as a single chunk.
        tm, chunk, n_blocks = R, R, 1
    else:
        # >= 2 blocks so the grid actually shards across both TensorCores on v7x.
        # TODO(synk): verify ("parallel",) splits across v7x TCs; otherwise use
        # pltpu.CORE_PARALLEL on this axis.
        n_blocks = max(2, -(-R // target_rows))
        rows_per_block = -(-R // n_blocks)
        tm = -(-rows_per_block // _CHUNK) * _CHUNK   # multiple of 64 (covers bf16's 16)
        chunk = _CHUNK
        n_blocks = -(-R // tm)  # last block may be ragged; Pallas masks its writeback

    out_dtype = dtype
    # Scoped-VMEM limit sized to the double-buffered blocks (+ margin), clamped so
    # it is safe on every generation's physical VMEM.
    need = 2 * L * tm * _LANES * itemsize + 2 * tm * _LANES * jnp.dtype(out_dtype).itemsize
    vmem_limit = min(max(int(need * 1.2) + (2 << 20), 32 << 20), 96 << 20)

    # Fold the scalar bias into the weights -> one fewer multiply per element.
    w_eff = (weights * bias).astype(jnp.float32)

    kernel = functools.partial(_bert_concat_kernel, chunk=chunk)
    out = pl.pallas_call(
        kernel,
        out_shape=jax.ShapeDtypeStruct((R, _LANES), out_dtype),
        grid_spec=pltpu.PrefetchScalarGridSpec(
            num_scalar_prefetch=0,
            grid=(n_blocks,),
            in_specs=[
                pl.BlockSpec(memory_space=pltpu.MemorySpace.SMEM),    # w_eff (13,)
                pl.BlockSpec((L, tm, _LANES), lambda i: (0, i, 0)),   # x block
            ],
            out_specs=pl.BlockSpec((tm, _LANES), lambda i: (i, 0)),
        ),
        compiler_params=pltpu.CompilerParams(
            dimension_semantics=("parallel",),
            vmem_limit_bytes=vmem_limit,
        ),
    )(w_eff, x3)

    flat = out.reshape(Npad)
    if Npad != N:
        flat = flat[:N]
    return flat.reshape(B, T, F, 1)


def bert_concat_ref(x, weights, bias):
    xp = jnp.transpose(x, (1, 2, 3, 0))      # [B, T, F, L]
    s = jax.nn.softmax(xp, axis=-1)
    return jnp.sum(s * weights, axis=-1, keepdims=True) * bias


if __name__ == "__main__":
    key = jax.random.PRNGKey(0)
    k_x, k_w, k_x2 = jax.random.split(key, 3)

    L = N_LAYERS
    # Deterministic parameters matching the nn.Module __init__ shapes:
    # weights ~ N(0, 0.1) of shape (13,), bias = ones(1).
    weights = 0.1 * jax.random.normal(k_w, (L,), dtype=jnp.float32)
    bias = jnp.ones((1,), dtype=jnp.float32)

    # Primary small shape (single-block path).
    B, T, F = 2, 8, 32
    x = jax.random.normal(k_x, (L, B, T, F), dtype=jnp.float32)
    out = jax.block_until_ready(bert_concat(x, weights, bias))
    ref = bert_concat_ref(x, weights, bias)
    assert out.shape == (B, T, F, 1)
    assert jnp.allclose(out, ref, atol=1e-4, rtol=1e-4)

    # Larger shape: multi-block grid, in-kernel chunk loop, ragged last block.
    B2, T2, F2 = 2, 80, 256
    x2 = jax.random.normal(k_x2, (L, B2, T2, F2), dtype=jnp.float32)
    out2 = jax.block_until_ready(bert_concat(x2, weights, bias))
    ref2 = bert_concat_ref(x2, weights, bias)
    assert out2.shape == (B2, T2, F2, 1)
    assert jnp.allclose(out2, ref2, atol=1e-4, rtol=1e-4)

    # bf16 activation path (halves HBM read traffic; accumulation stays f32).
    out_bf16 = jax.block_until_ready(bert_concat(x2.astype(jnp.bfloat16), weights, bias))
    assert out_bf16.dtype == jnp.bfloat16
    assert jnp.allclose(out_bf16.astype(jnp.float32), ref2, atol=3e-2, rtol=3e-2)

    print("KERNEL_OK")
</pallas_src>

<mosaic_0001>
module attributes {stable_mosaic.version = 11 : i64} {
  func.func @_bert_concat_kernel(%arg0: i32, %arg1: memref<13xf32, #tpu.memory_space<smem>>, %arg2: memref<13x4x128xf32, #tpu.memory_space<vmem>>, %arg3: memref<4x128xf32, #tpu.memory_space<vmem>>) attributes {dimension_semantics = [#tpu.dimension_semantics<parallel>], iteration_bounds = array<i64: 1>, scalar_prefetch = 0 : i64, scratch_operands = 0 : i64, tpu.core_type = #tpu.core_type<tc>, window_params = [{transform_indices = @transform_0, window_bounds = array<i64: 13>}, {transform_indices = @transform_1, window_bounds = array<i64: 13, 4, 128>}, {transform_indices = @transform_2, window_bounds = array<i64: 4, 128>}]} {
    %c0 = arith.constant 0 : index
    %0 = memref.load %arg1[%c0] : memref<13xf32, #tpu.memory_space<smem>>
    %c1 = arith.constant 1 : index
    %1 = memref.load %arg1[%c1] : memref<13xf32, #tpu.memory_space<smem>>
    %c2 = arith.constant 2 : index
    %2 = memref.load %arg1[%c2] : memref<13xf32, #tpu.memory_space<smem>>
    %c3 = arith.constant 3 : index
    %3 = memref.load %arg1[%c3] : memref<13xf32, #tpu.memory_space<smem>>
    %c4 = arith.constant 4 : index
    %4 = memref.load %arg1[%c4] : memref<13xf32, #tpu.memory_space<smem>>
    %c5 = arith.constant 5 : index
    %5 = memref.load %arg1[%c5] : memref<13xf32, #tpu.memory_space<smem>>
    %c6 = arith.constant 6 : index
    %6 = memref.load %arg1[%c6] : memref<13xf32, #tpu.memory_space<smem>>
    %c7 = arith.constant 7 : index
    %7 = memref.load %arg1[%c7] : memref<13xf32, #tpu.memory_space<smem>>
    %c8 = arith.constant 8 : index
    %8 = memref.load %arg1[%c8] : memref<13xf32, #tpu.memory_space<smem>>
    %c9 = arith.constant 9 : index
    %9 = memref.load %arg1[%c9] : memref<13xf32, #tpu.memory_space<smem>>
    %c10 = arith.constant 10 : index
    %10 = memref.load %arg1[%c10] : memref<13xf32, #tpu.memory_space<smem>>
    %c11 = arith.constant 11 : index
    %11 = memref.load %arg1[%c11] : memref<13xf32, #tpu.memory_space<smem>>
    %c12 = arith.constant 12 : index
    %12 = memref.load %arg1[%c12] : memref<13xf32, #tpu.memory_space<smem>>
    %c0_0 = arith.constant 0 : index
    %c0_1 = arith.constant 0 : index
    %c0_2 = arith.constant 0 : index
    %13 = vector.load %arg2[%c0_0, %c0_1, %c0_2] : memref<13x4x128xf32, #tpu.memory_space<vmem>>, vector<1x4x128xf32>
    %14 = vector.shape_cast %13 : vector<1x4x128xf32> to vector<4x128xf32>
    %c1_3 = arith.constant 1 : index
    %c0_4 = arith.constant 0 : index
    %c0_5 = arith.constant 0 : index
    %15 = vector.load %arg2[%c1_3, %c0_4, %c0_5] : memref<13x4x128xf32, #tpu.memory_space<vmem>>, vector<1x4x128xf32>
    %16 = vector.shape_cast %15 : vector<1x4x128xf32> to vector<4x128xf32>
    %17 = arith.maximumf %14, %16 : vector<4x128xf32>
    %c2_6 = arith.constant 2 : index
    %c0_7 = arith.constant 0 : index
    %c0_8 = arith.constant 0 : index
    %18 = vector.load %arg2[%c2_6, %c0_7, %c0_8] : memref<13x4x128xf32, #tpu.memory_space<vmem>>, vector<1x4x128xf32>
    %19 = vector.shape_cast %18 : vector<1x4x128xf32> to vector<4x128xf32>
    %20 = arith.maximumf %17, %19 : vector<4x128xf32>
    %c3_9 = arith.constant 3 : index
    %c0_10 = arith.constant 0 : index
    %c0_11 = arith.constant 0 : index
    %21 = vector.load %arg2[%c3_9, %c0_10, %c0_11] : memref<13x4x128xf32, #tpu.memory_space<vmem>>, vector<1x4x128xf32>
    %22 = vector.shape_cast %21 : vector<1x4x128xf32> to vector<4x128xf32>
    %23 = arith.maximumf %20, %22 : vector<4x128xf32>
    %c4_12 = arith.constant 4 : index
    %c0_13 = arith.constant 0 : index
    %c0_14 = arith.constant 0 : index
    %24 = vector.load %arg2[%c4_12, %c0_13, %c0_14] : memref<13x4x128xf32, #tpu.memory_space<vmem>>, vector<1x4x128xf32>
    %25 = vector.shape_cast %24 : vector<1x4x128xf32> to vector<4x128xf32>
    %26 = arith.maximumf %23, %25 : vector<4x128xf32>
    %c5_15 = arith.constant 5 : index
    %c0_16 = arith.constant 0 : index
    %c0_17 = arith.constant 0 : index
    %27 = vector.load %arg2[%c5_15, %c0_16, %c0_17] : memref<13x4x128xf32, #tpu.memory_space<vmem>>, vector<1x4x128xf32>
    %28 = vector.shape_cast %27 : vector<1x4x128xf32> to vector<4x128xf32>
    %29 = arith.maximumf %26, %28 : vector<4x128xf32>
    %c6_18 = arith.constant 6 : index
    %c0_19 = arith.constant 0 : index
    %c0_20 = arith.constant 0 : index
    %30 = vector.load %arg2[%c6_18, %c0_19, %c0_20] : memref<13x4x128xf32, #tpu.memory_space<vmem>>, vector<1x4x128xf32>
    %31 = vector.shape_cast %30 : vector<1x4x128xf32> to vector<4x128xf32>
    %32 = arith.maximumf %29, %31 : vector<4x128xf32>
    %c7_21 = arith.constant 7 : index
    %c0_22 = arith.constant 0 : index
    %c0_23 = arith.constant 0 : index
    %33 = vector.load %arg2[%c7_21, %c0_22, %c0_23] : memref<13x4x128xf32, #tpu.memory_space<vmem>>, vector<1x4x128xf32>
    %34 = vector.shape_cast %33 : vector<1x4x128xf32> to vector<4x128xf32>
    %35 = arith.maximumf %32, %34 : vector<4x128xf32>
    %c8_24 = arith.constant 8 : index
    %c0_25 = arith.constant 0 : index
    %c0_26 = arith.constant 0 : index
    %36 = vector.load %arg2[%c8_24, %c0_25, %c0_26] : memref<13x4x128xf32, #tpu.memory_space<vmem>>, vector<1x4x128xf32>
    %37 = vector.shape_cast %36 : vector<1x4x128xf32> to vector<4x128xf32>
    %38 = arith.maximumf %35, %37 : vector<4x128xf32>
    %c9_27 = arith.constant 9 : index
    %c0_28 = arith.constant 0 : index
    %c0_29 = arith.constant 0 : index
    %39 = vector.load %arg2[%c9_27, %c0_28, %c0_29] : memref<13x4x128xf32, #tpu.memory_space<vmem>>, vector<1x4x128xf32>
    %40 = vector.shape_cast %39 : vector<1x4x128xf32> to vector<4x128xf32>
    %41 = arith.maximumf %38, %40 : vector<4x128xf32>
    %c10_30 = arith.constant 10 : index
    %c0_31 = arith.constant 0 : index
    %c0_32 = arith.constant 0 : index
    %42 = vector.load %arg2[%c10_30, %c0_31, %c0_32] : memref<13x4x128xf32, #tpu.memory_space<vmem>>, vector<1x4x128xf32>
    %43 = vector.shape_cast %42 : vector<1x4x128xf32> to vector<4x128xf32>
    %44 = arith.maximumf %41, %43 : vector<4x128xf32>
    %c11_33 = arith.constant 11 : index
    %c0_34 = arith.constant 0 : index
    %c0_35 = arith.constant 0 : index
    %45 = vector.load %arg2[%c11_33, %c0_34, %c0_35] : memref<13x4x128xf32, #tpu.memory_space<vmem>>, vector<1x4x128xf32>
    %46 = vector.shape_cast %45 : vector<1x4x128xf32> to vector<4x128xf32>
    %47 = arith.maximumf %44, %46 : vector<4x128xf32>
    %c12_36 = arith.constant 12 : index
    %c0_37 = arith.constant 0 : index
    %c0_38 = arith.constant 0 : index
    %48 = vector.load %arg2[%c12_36, %c0_37, %c0_38] : memref<13x4x128xf32, #tpu.memory_space<vmem>>, vector<1x4x128xf32>
    %49 = vector.shape_cast %48 : vector<1x4x128xf32> to vector<4x128xf32>
    %50 = arith.maximumf %47, %49 : vector<4x128xf32>
    %c0_39 = arith.constant 0 : index
    %c0_40 = arith.constant 0 : index
    %c0_41 = arith.constant 0 : index
    %51 = vector.load %arg2[%c0_39, %c0_40, %c0_41] : memref<13x4x128xf32, #tpu.memory_space<vmem>>, vector<1x4x128xf32>
    %52 = vector.shape_cast %51 : vector<1x4x128xf32> to vector<4x128xf32>
    %53 = arith.subf %52, %50 : vector<4x128xf32>
    %54 = math.exp %53 : vector<4x128xf32>
    %55 = vector.broadcast %0 : f32 to vector<4x128xf32>
    %56 = arith.mulf %54, %55 : vector<4x128xf32>
    %c1_42 = arith.constant 1 : index
    %c0_43 = arith.constant 0 : index
    %c0_44 = arith.constant 0 : index
    %57 = vector.load %arg2[%c1_42, %c0_43, %c0_44] : memref<13x4x128xf32, #tpu.memory_space<vmem>>, vector<1x4x128xf32>
    %58 = vector.shape_cast %57 : vector<1x4x128xf32> to vector<4x128xf32>
    %59 = arith.subf %58, %50 : vector<4x128xf32>
    %60 = math.exp %59 : vector<4x128xf32>
    %61 = arith.addf %54, %60 : vector<4x128xf32>
    %62 = vector.broadcast %1 : f32 to vector<4x128xf32>
    %63 = arith.mulf %60, %62 : vector<4x128xf32>
    %64 = arith.addf %56, %63 : vector<4x128xf32>
    %c2_45 = arith.constant 2 : index
    %c0_46 = arith.constant 0 : index
    %c0_47 = arith.constant 0 : index
    %65 = vector.load %arg2[%c2_45, %c0_46, %c0_47] : memref<13x4x128xf32, #tpu.memory_space<vmem>>, vector<1x4x128xf32>
    %66 = vector.shape_cast %65 : vector<1x4x128xf32> to vector<4x128xf32>
    %67 = arith.subf %66, %50 : vector<4x128xf32>
    %68 = math.exp %67 : vector<4x128xf32>
    %69 = arith.addf %61, %68 : vector<4x128xf32>
    %70 = vector.broadcast %2 : f32 to vector<4x128xf32>
    %71 = arith.mulf %68, %70 : vector<4x128xf32>
    %72 = arith.addf %64, %71 : vector<4x128xf32>
    %c3_48 = arith.constant 3 : index
    %c0_49 = arith.constant 0 : index
    %c0_50 = arith.constant 0 : index
    %73 = vector.load %arg2[%c3_48, %c0_49, %c0_50] : memref<13x4x128xf32, #tpu.memory_space<vmem>>, vector<1x4x128xf32>
    %74 = vector.shape_cast %73 : vector<1x4x128xf32> to vector<4x128xf32>
    %75 = arith.subf %74, %50 : vector<4x128xf32>
    %76 = math.exp %75 : vector<4x128xf32>
    %77 = arith.addf %69, %76 : vector<4x128xf32>
    %78 = vector.broadcast %3 : f32 to vector<4x128xf32>
    %79 = arith.mulf %76, %78 : vector<4x128xf32>
    %80 = arith.addf %72, %79 : vector<4x128xf32>
    %c4_51 = arith.constant 4 : index
    %c0_52 = arith.constant 0 : index
    %c0_53 = arith.constant 0 : index
    %81 = vector.load %arg2[%c4_51, %c0_52, %c0_53] : memref<13x4x128xf32, #tpu.memory_space<vmem>>, vector<1x4x128xf32>
    %82 = vector.shape_cast %81 : vector<1x4x128xf32> to vector<4x128xf32>
    %83 = arith.subf %82, %50 : vector<4x128xf32>
    %84 = math.exp %83 : vector<4x128xf32>
    %85 = arith.addf %77, %84 : vector<4x128xf32>
    %86 = vector.broadcast %4 : f32 to vector<4x128xf32>
    %87 = arith.mulf %84, %86 : vector<4x128xf32>
    %88 = arith.addf %80, %87 : vector<4x128xf32>
    %c5_54 = arith.constant 5 : index
    %c0_55 = arith.constant 0 : index
    %c0_56 = arith.constant 0 : index
    %89 = vector.load %arg2[%c5_54, %c0_55, %c0_56] : memref<13x4x128xf32, #tpu.memory_space<vmem>>, vector<1x4x128xf32>
    %90 = vector.shape_cast %89 : vector<1x4x128xf32> to vector<4x128xf32>
    %91 = arith.subf %90, %50 : vector<4x128xf32>
    %92 = math.exp %91 : vector<4x128xf32>
    %93 = arith.addf %85, %92 : vector<4x128xf32>
    %94 = vector.broadcast %5 : f32 to vector<4x128xf32>
    %95 = arith.mulf %92, %94 : vector<4x128xf32>
    %96 = arith.addf %88, %95 : vector<4x128xf32>
    %c6_57 = arith.constant 6 : index
    %c0_58 = arith.constant 0 : index
    %c0_59 = arith.constant 0 : index
    %97 = vector.load %arg2[%c6_57, %c0_58, %c0_59] : memref<13x4x128xf32, #tpu.memory_space<vmem>>, vector<1x4x128xf32>
    %98 = vector.shape_cast %97 : vector<1x4x128xf32> to vector<4x128xf32>
    %99 = arith.subf %98, %50 : vector<4x128xf32>
    %100 = math.exp %99 : vector<4x128xf32>
    %101 = arith.addf %93, %100 : vector<4x128xf32>
    %102 = vector.broadcast %6 : f32 to vector<4x128xf32>
    %103 = arith.mulf %100, %102 : vector<4x128xf32>
    %104 = arith.addf %96, %103 : vector<4x128xf32>
    %c7_60 = arith.constant 7 : index
    %c0_61 = arith.constant 0 : index
    %c0_62 = arith.constant 0 : index
    %105 = vector.load %arg2[%c7_60, %c0_61, %c0_62] : memref<13x4x128xf32, #tpu.memory_space<vmem>>, vector<1x4x128xf32>
    %106 = vector.shape_cast %105 : vector<1x4x128xf32> to vector<4x128xf32>
    %107 = arith.subf %106, %50 : vector<4x128xf32>
    %108 = math.exp %107 : vector<4x128xf32>
    %109 = arith.addf %101, %108 : vector<4x128xf32>
    %110 = vector.broadcast %7 : f32 to vector<4x128xf32>
    %111 = arith.mulf %108, %110 : vector<4x128xf32>
    %112 = arith.addf %104, %111 : vector<4x128xf32>
    %c8_63 = arith.constant 8 : index
    %c0_64 = arith.constant 0 : index
    %c0_65 = arith.constant 0 : index
    %113 = vector.load %arg2[%c8_63, %c0_64, %c0_65] : memref<13x4x128xf32, #tpu.memory_space<vmem>>, vector<1x4x128xf32>
    %114 = vector.shape_cast %113 : vector<1x4x128xf32> to vector<4x128xf32>
    %115 = arith.subf %114, %50 : vector<4x128xf32>
    %116 = math.exp %115 : vector<4x128xf32>
    %117 = arith.addf %109, %116 : vector<4x128xf32>
    %118 = vector.broadcast %8 : f32 to vector<4x128xf32>
    %119 = arith.mulf %116, %118 : vector<4x128xf32>
    %120 = arith.addf %112, %119 : vector<4x128xf32>
    %c9_66 = arith.constant 9 : index
    %c0_67 = arith.constant 0 : index
    %c0_68 = arith.constant 0 : index
    %121 = vector.load %arg2[%c9_66, %c0_67, %c0_68] : memref<13x4x128xf32, #tpu.memory_space<vmem>>, vector<1x4x128xf32>
    %122 = vector.shape_cast %121 : vector<1x4x128xf32> to vector<4x128xf32>
    %123 = arith.subf %122, %50 : vector<4x128xf32>
    %124 = math.exp %123 : vector<4x128xf32>
    %125 = arith.addf %117, %124 : vector<4x128xf32>
    %126 = vector.broadcast %9 : f32 to vector<4x128xf32>
    %127 = arith.mulf %124, %126 : vector<4x128xf32>
    %128 = arith.addf %120, %127 : vector<4x128xf32>
    %c10_69 = arith.constant 10 : index
    %c0_70 = arith.constant 0 : index
    %c0_71 = arith.constant 0 : index
    %129 = vector.load %arg2[%c10_69, %c0_70, %c0_71] : memref<13x4x128xf32, #tpu.memory_space<vmem>>, vector<1x4x128xf32>
    %130 = vector.shape_cast %129 : vector<1x4x128xf32> to vector<4x128xf32>
    %131 = arith.subf %130, %50 : vector<4x128xf32>
    %132 = math.exp %131 : vector<4x128xf32>
    %133 = arith.addf %125, %132 : vector<4x128xf32>
    %134 = vector.broadcast %10 : f32 to vector<4x128xf32>
    %135 = arith.mulf %132, %134 : vector<4x128xf32>
    %136 = arith.addf %128, %135 : vector<4x128xf32>
    %c11_72 = arith.constant 11 : index
    %c0_73 = arith.constant 0 : index
    %c0_74 = arith.constant 0 : index
    %137 = vector.load %arg2[%c11_72, %c0_73, %c0_74] : memref<13x4x128xf32, #tpu.memory_space<vmem>>, vector<1x4x128xf32>
    %138 = vector.shape_cast %137 : vector<1x4x128xf32> to vector<4x128xf32>
    %139 = arith.subf %138, %50 : vector<4x128xf32>
    %140 = math.exp %139 : vector<4x128xf32>
    %141 = arith.addf %133, %140 : vector<4x128xf32>
    %142 = vector.broadcast %11 : f32 to vector<4x128xf32>
    %143 = arith.mulf %140, %142 : vector<4x128xf32>
    %144 = arith.addf %136, %143 : vector<4x128xf32>
    %c12_75 = arith.constant 12 : index
    %c0_76 = arith.constant 0 : index
    %c0_77 = arith.constant 0 : index
    %145 = vector.load %arg2[%c12_75, %c0_76, %c0_77] : memref<13x4x128xf32, #tpu.memory_space<vmem>>, vector<1x4x128xf32>
    %146 = vector.shape_cast %145 : vector<1x4x128xf32> to vector<4x128xf32>
    %147 = arith.subf %146, %50 : vector<4x128xf32>
    %148 = math.exp %147 : vector<4x128xf32>
    %149 = arith.addf %141, %148 : vector<4x128xf32>
    %150 = vector.broadcast %12 : f32 to vector<4x128xf32>
    %151 = arith.mulf %148, %150 : vector<4x128xf32>
    %152 = arith.addf %144, %151 : vector<4x128xf32>
    %153 = arith.divf %152, %149 : vector<4x128xf32>
    %c0_78 = arith.constant 0 : index
    %c0_79 = arith.constant 0 : index
    %154 = vector.load %arg3[%c0_78, %c0_79] : memref<4x128xf32, #tpu.memory_space<vmem>>, vector<4x128xf32>
    tpu.vector_store %arg3[%c0_78, %c0_79], %153 {strides = array<i32>} : memref<4x128xf32, #tpu.memory_space<vmem>>, vector<4x128xf32>,
    return
  }
  func.func @transform_0(%arg0: i32) -> i32 {
    %c0_i32 = arith.constant 0 : i32
    %c0_i32_0 = arith.constant 0 : i32
    return %c0_i32 : i32
  }
  func.func @transform_1(%arg0: i32) -> (i32, i32, i32) {
    %c0_i32 = arith.constant 0 : i32
    %c0_i32_0 = arith.constant 0 : i32
    %c0_i32_1 = arith.constant 0 : i32
    return %c0_i32, %arg0, %c0_i32_0 : i32, i32, i32
  }
  func.func @transform_2(%arg0: i32) -> (i32, i32) {
    %c0_i32 = arith.constant 0 : i32
    %c0_i32_0 = arith.constant 0 : i32
    return %arg0, %c0_i32 : i32, i32
  }
}

</mosaic_0001>

<llo_original>
// kernel: tpu_custom_call.1
$region0: #{tpu_custom_call.1}
  #allocation0 [shape = 'u32[]', space=smem, size = 0x4, offset = 0x4, fixed_abs, tag = 'smem constant byte address 0x4 - core index']
  #allocation1 [shape = 'u32[144,128]{1,0:T(1,128)}', space=vmem, size = 0x12000, scoped, tag = 'internal scratch']
  %s0 = inlined_call_operand.hbm [shape: f32[13], index: 0, kind: input, shape index: {}]
  %s1 = inlined_call_operand.hbm [shape: f32[13,4,128], index: 1, kind: input, shape index: {}]
  %s2 = inlined_call_operand.hbm [shape: f32[4,128], index: 2, kind: output, shape index: {}]
  %s3 = sld [smem:[#allocation0]]
  $region26: #{tpu_custom_call.1} parent=0
    _
  %s5 = ssub.s32 1, %s3
  %s6 = scalar_select 0, %s5, %s3
  $region1: #{tpu_custom_call.1} parent=0
    #allocation2 [shape = 'u8[512]{0}', space=smem, size = 0x200, scoped, tag = 'input window, operand 0, single buffered']
    #allocation3 [shape = 's32[1]{0}', space=sflag, size = 0x4, scoped, tag = 'scoped memory for tpu_custom_call.1']
    #allocation4 [shape = 's32[1]{0}', space=sflag, size = 0x4, scoped, tag = 'scoped memory for tpu_custom_call.1']
    #allocation5 [shape = 's32[1]{0}', space=sflag, size = 0x4, scoped, tag = 'scoped memory for tpu_custom_call.1']
    #allocation6 [shape = 'u8[26624]{0}', space=vmem, size = 0x6800, scoped, tag = 'input window, operand 1, single buffered']
    #allocation7 [shape = 'u8[2048]{0}', space=vmem, size = 0x800, scoped, tag = 'output window, operand 0, single buffered']
    %7 = vsyncpa [#allocation5], 0
    %8 = vsyncpa [#allocation3], 0
    %9 = vsyncpa [#allocation4], 0
    // Predicated region
    $region2: #{tpu_custom_call.1} parent=1 // pred_check
      _
    $region3: #{tpu_custom_call.1} parent=1 // pred_check_branch
      %11 = sbr.rel (0) target = $region5
    $region4: #{tpu_custom_call.1} parent=1 // pred_region
      %s13 = ssub.s32 16, 16
      %14 = vsyncadd [#allocation5], %s13
      %17 = dma.hbm_to_smem %s0, 16, [#allocation2], [#allocation5]
    $region5: #{tpu_custom_call.1} parent=1 // pred_fallthru
      _
    // Predicated region
    $region6: #{tpu_custom_call.1} parent=1 // pred_check
      _
    $region7: #{tpu_custom_call.1} parent=1 // pred_check_branch
      %19 = sbr.rel (0) target = $region9
    $region8: #{tpu_custom_call.1} parent=1 // pred_region
      %s21 = ssub.s32 832, 832
      %22 = vsyncadd [#allocation3], %s21
      %s23 = sshll.u32 [#allocation6], 4
      %s24 = int_to_ptr.vmem [resolvable:$true] %s23
      %29 = dma.hbm_to_vmem [thread:$0]  %s1, 832, %s24, [#allocation3], 64, 64, 4
    $region9: #{tpu_custom_call.1} parent=1 // pred_fallthru
      _
    // Predicated region
    $region10: #{tpu_custom_call.1} parent=1 // pred_check
      _
    $region11: #{tpu_custom_call.1} parent=1 // pred_check_branch
      %31 = sbr.rel (0) target = $region13
    $region12: #{tpu_custom_call.1} parent=1 // pred_region
      %32 = dma.done [#allocation5], 16
    $region13: #{tpu_custom_call.1} parent=1 // pred_fallthru
      _
    // Predicated region
    $region14: #{tpu_custom_call.1} parent=1 // pred_check
      _
    $region15: #{tpu_custom_call.1} parent=1 // pred_check_branch
      %34 = sbr.rel (0) target = $region17
    $region16: #{tpu_custom_call.1} parent=1 // pred_region
      %35 = dma.done [#allocation3], 832
    $region17: #{tpu_custom_call.1} parent=1 // pred_fallthru
      _
    %36 = sfence
    %s37 = sld [smem:[#allocation2]]
    %s38 = sld [smem:[#allocation2 + $0x1]]
    %s39 = sld [smem:[#allocation2 + $0x2]]
    %s40 = sld [smem:[#allocation2 + $0x3]]
    %s41 = sld [smem:[#allocation2 + $0x4]]
    %s42 = sld [smem:[#allocation2 + $0x5]]
    %s43 = sld [smem:[#allocation2 + $0x6]]
    %s44 = sld [smem:[#allocation2 + $0x7]]
    %s45 = sld [smem:[#allocation2 + $0x8]]
    %s46 = sld [smem:[#allocation2 + $0x9]]
    %s47 = sld [smem:[#allocation2 + $0xa]]
    %s48 = sld [smem:[#allocation2 + $0xb]]
    %s49 = sld [smem:[#allocation2 + $0xc]]
    %v50 = vld [vmem:[#allocation6] sm:$0xf]
    %s51 = scalar_lea.vmem [#allocation6], 4
    %v52 = vld [vmem:[%s51] sm:$0xf]
    %v53 = vmax.f32 %v50, %v52
    %s54 = scalar_lea.vmem [#allocation6], 8
    %v55 = vld [vmem:[%s54] sm:$0xf]
    %v56 = vmax.f32 %v53, %v55
    %s57 = scalar_lea.vmem [#allocation6], 12
    %v58 = vld [vmem:[%s57] sm:$0xf]
    %v59 = vmax.f32 %v56, %v58
    %s60 = scalar_lea.vmem [#allocation6], 16
    %v61 = vld [vmem:[%s60] sm:$0xf]
    %v62 = vmax.f32 %v59, %v61
    %s63 = scalar_lea.vmem [#allocation6], 20
    %v64 = vld [vmem:[%s63] sm:$0xf]
    %v65 = vmax.f32 %v62, %v64
    %s66 = scalar_lea.vmem [#allocation6], 24
    %v67 = vld [vmem:[%s66] sm:$0xf]
    %v68 = vmax.f32 %v65, %v67
    %s69 = scalar_lea.vmem [#allocation6], 28
    %v70 = vld [vmem:[%s69] sm:$0xf]
    %v71 = vmax.f32 %v68, %v70
    %s72 = scalar_lea.vmem [#allocation6], 32
    %v73 = vld [vmem:[%s72] sm:$0xf]
    %v74 = vmax.f32 %v71, %v73
    %s75 = scalar_lea.vmem [#allocation6], 36
    %v76 = vld [vmem:[%s75] sm:$0xf]
    %v77 = vmax.f32 %v74, %v76
    %s78 = scalar_lea.vmem [#allocation6], 40
    %v79 = vld [vmem:[%s78] sm:$0xf]
    %v80 = vmax.f32 %v77, %v79
    %s81 = scalar_lea.vmem [#allocation6], 44
    %v82 = vld [vmem:[%s81] sm:$0xf]
    %v83 = vmax.f32 %v80, %v82
    %s84 = scalar_lea.vmem [#allocation6], 48
    %v85 = vld [vmem:[%s84] sm:$0xf]
    %v86 = vmax.f32 %v83, %v85
    %v87 = vsub.f32 %v50, %v86
    %v88 = vmul.f32 %v87, 1.442695
    %v89 = vpow.pop %v88
    %v90 = vstv %s37
    %v91 = vmul.f32 %v89, %v90
    %v92 = vsub.f32 %v52, %v86
    %v93 = vmul.f32 %v92, 1.442695
    %v94 = vpow.pop %v93
    %v95 = vadd.f32 %v89, %v94
    %v96 = vstv %s38
    %v97 = vmul.f32 %v94, %v96
    %v98 = vadd.f32 %v91, %v97
    %v99 = vsub.f32 %v55, %v86
    %v100 = vmul.f32 %v99, 1.442695
    %v101 = vpow.pop %v100
    %v102 = vadd.f32 %v95, %v101
    %v103 = vstv %s39
    %v104 = vmul.f32 %v101, %v103
    %v105 = vadd.f32 %v98, %v104
    %v106 = vsub.f32 %v58, %v86
    %v107 = vmul.f32 %v106, 1.442695
    %v108 = vpow.pop %v107
    %v109 = vadd.f32 %v102, %v108
    %v110 = vstv %s40
    %v111 = vmul.f32 %v108, %v110
    %v112 = vadd.f32 %v105, %v111
    %v113 = vsub.f32 %v61, %v86
    %v114 = vmul.f32 %v113, 1.442695
    %v115 = vpow.pop %v114
    %v116 = vadd.f32 %v109, %v115
    %v117 = vstv %s41
    %v118 = vmul.f32 %v115, %v117
    %v119 = vadd.f32 %v112, %v118
    %v120 = vsub.f32 %v64, %v86
    %v121 = vmul.f32 %v120, 1.442695
    %v122 = vpow.pop %v121
    %v123 = vadd.f32 %v116, %v122
    %v124 = vstv %s42
    %v125 = vmul.f32 %v122, %v124
    %v126 = vadd.f32 %v119, %v125
    %v127 = vsub.f32 %v67, %v86
    %v128 = vmul.f32 %v127, 1.442695
    %v129 = vpow.pop %v128
    %v130 = vadd.f32 %v123, %v129
    %v131 = vstv %s43
    %v132 = vmul.f32 %v129, %v131
    %v133 = vadd.f32 %v126, %v132
    %v134 = vsub.f32 %v70, %v86
    %v135 = vmul.f32 %v134, 1.442695
    %v136 = vpow.pop %v135
    %v137 = vadd.f32 %v130, %v136
    %v138 = vstv %s44
    %v139 = vmul.f32 %v136, %v138
    %v140 = vadd.f32 %v133, %v139
    %v141 = vsub.f32 %v73, %v86
    %v142 = vmul.f32 %v141, 1.442695
    %v143 = vpow.pop %v142
    %v144 = vadd.f32 %v137, %v143
    %v145 = vstv %s45
    %v146 = vmul.f32 %v143, %v145
    %v147 = vadd.f32 %v140, %v146
    %v148 = vsub.f32 %v76, %v86
    %v149 = vmul.f32 %v148, 1.442695
    %v150 = vpow.pop %v149
    %v151 = vadd.f32 %v144, %v150
    %v152 = vstv %s46
    %v153 = vmul.f32 %v150, %v152
    %v154 = vadd.f32 %v147, %v153
    %v155 = vsub.f32 %v79, %v86
    %v156 = vmul.f32 %v155, 1.442695
    %v157 = vpow.pop %v156
    %v158 = vadd.f32 %v151, %v157
    %v159 = vstv %s47
    %v160 = vmul.f32 %v157, %v159
    %v161 = vadd.f32 %v154, %v160
    %v162 = vsub.f32 %v82, %v86
    %v163 = vmul.f32 %v162, 1.442695
    %v164 = vpow.pop %v163
    %v165 = vadd.f32 %v158, %v164
    %v166 = vstv %s48
    %v167 = vmul.f32 %v164, %v166
    %v168 = vadd.f32 %v161, %v167
    %v169 = vsub.f32 %v85, %v86
    %v170 = vmul.f32 %v169, 1.442695
    %v171 = vpow.pop %v170
    %v172 = vadd.f32 %v165, %v171
    %v173 = vstv %s49
    %v174 = vmul.f32 %v171, %v173
    %v175 = vadd.f32 %v168, %v174
    %v176 = vrcp.pop %v172
    %v177 = vmul.f32 %v175, %v176
    %178 = vst [vmem:[#allocation7] sm:$0xf] %v177
    // Predicated region
    $region18: #{tpu_custom_call.1} parent=1 // pred_check
      _
    $region19: #{tpu_custom_call.1} parent=1 // pred_check_branch
      %180 = sbr.rel (0) target = $region21
    $region20: #{tpu_custom_call.1} parent=1 // pred_region
      %s182 = ssub.s32 64, 64
      %183 = vsyncadd [#allocation4], %s182
      %s185 = sshll.u32 [#allocation7], 4
      %s186 = int_to_ptr.vmem [resolvable:$true] %s185
      %188 = dma.vmem_to_hbm [thread:$0]  %s186, 64, %s2, [#allocation4]
    $region21: #{tpu_custom_call.1} parent=1 // pred_fallthru
      _
    // Predicated region
    $region22: #{tpu_custom_call.1} parent=1 // pred_check
      _
    $region23: #{tpu_custom_call.1} parent=1 // pred_check_branch
      %190 = sbr.rel (0) target = $region25
    $region24: #{tpu_custom_call.1} parent=1 // pred_region
      %191 = dma.done [#allocation4], 64
    $region25: #{tpu_custom_call.1} parent=1 // pred_fallthru
      _
    %192 = vsyncpa [#allocation3], 1
    %193 = vsyncpa [#allocation4], 1
    %194 = vsyncpa [#allocation5], 1

</llo_original>
